<compile_context>
chip_gen: v7x
topology: tpu7x:2x2x1
jax: 0.10.0
libtpu: 0.0.40
codegen_flags: <defaults>
</compile_context>

<pallas_src>
import jax
import jax.numpy as jnp
import numpy as np
from jax.experimental import pallas as pl
from jax.experimental.pallas import tpu as pltpu


def _round_up(v, m):
    return -(-v // m) * m


def _choose_batch_block(n, max_nb=8):
    """Batch-block size: either the full batch or a multiple-of-8 divisor."""
    if n <= max_nb:
        return n
    nb = max_nb - max_nb % 8
    while nb >= 8:
        if n % nb == 0:
            return nb
        nb -= 8
    return n


def _choose_hw_tile(hw, nb, k, bytes_per_elem=2, budget=8 << 20):
    """Largest HW tile (multiple of 8, dividing HW) whose double-buffered
    patches block stays within `budget` bytes (lane padding included)."""
    k_lanes = _round_up(k, 128)
    max_rows = max(8, budget // (2 * nb * k_lanes * bytes_per_elem))
    if hw <= max_rows:
        return hw
    t = max_rows - max_rows % 8
    while t >= 8:
        if hw % t == 0:
            return t
        t -= 8
    return hw  # fallback: single full-extent tile


def _cam_kernel(patches_ref, wconv_ref, wcls_ref, out_ref, acc_ref):
    """One (batch_block, hw_tile) grid step.

    patches_ref: (Nb, THW, K)  bf16 im2col patches of this spatial tile
    wconv_ref:   (K, Cp)       bf16 conv weight, Cout zero-padded to Cp=128k
    wcls_ref:    (Cp, Dp)      f32 classifier weight, pre-scaled by 1/(H*W)
    out_ref:     (Nb, Dp)      f32 logits (Dout zero-padded, lane-dense)
    acc_ref:     (Nb, Cp)      f32 running spatial sum of ReLU(conv) features
    """
    s = pl.program_id(1)
    nb = patches_ref.shape[0]

    @pl.when(s == 0)
    def _init():
        acc_ref[...] = jnp.zeros_like(acc_ref)

    w = wconv_ref[...]  # hoisted: resident across the unrolled image loop
    for i in range(nb):  # static unroll over images in this batch block
        # Conv2d(3x3, pad=1) over this spatial tile as one MXU matmul
        # (THW >= 256 rows -> full M occupancy); f32 accumulation.
        feat = jnp.dot(patches_ref[i], w,
                       preferred_element_type=jnp.float32)      # (THW, Cp)
        feat = jnp.maximum(feat, 0.0)                            # ReLU
        # Partial AdaptiveAvgPool2d(1): spatial sum of this tile (XLU).
        acc_ref[i:i + 1, :] += feat.sum(axis=0, keepdims=True)   # (1, Cp)

    @pl.when(s == pl.num_programs(1) - 1)
    def _finalize():
        # Flatten + Linear(bias=False); the 1/(H*W) pool scale is already
        # folded into wcls, so one matmul on the accumulated sums finishes
        # the forward pass for the whole batch block.
        out_ref[...] = jnp.dot(acc_ref[...], wcls_ref[...],
                               preferred_element_type=jnp.float32
                               ).astype(out_ref.dtype)


def cam_forward(x_nchw, w_conv_oihw, w_cls):
    """Pallas implementation of CAM_model.forward."""
    N, Cin, H, W = x_nchw.shape
    Cout = w_conv_oihw.shape[0]
    Dout = w_cls.shape[0]
    HW = H * W
    K = 9 * Cin
    Cp = _round_up(Cout, 128)   # pad feature channels -> lane-dense conv out
    Dp = _round_up(Dout, 128)   # pad logits -> unmasked full-lane stores

    # ---- glue: layout changes + im2col (no model FLOPs) ----
    x = jnp.transpose(x_nchw, (0, 2, 3, 1))                    # NCHW -> NHWC
    xp = jnp.pad(x, ((0, 0), (1, 1), (1, 1), (0, 0)))          # padding=1
    cols = [xp[:, dy:dy + H, dx:dx + W, :]
            for dy in range(3) for dx in range(3)]
    patches = jnp.concatenate(cols, axis=-1).reshape(N, HW, K)
    patches = patches.astype(jnp.bfloat16)

    # Conv weight OIHW -> (kh*kw*Cin, Cout), zero-padded to Cp, bf16.
    w_mat = jnp.transpose(w_conv_oihw, (2, 3, 1, 0)).reshape(K, Cout)
    w_mat = jnp.pad(w_mat, ((0, 0), (0, Cp - Cout))).astype(jnp.bfloat16)

    # Classifier weight (Dout, Cout) -> (Cp, Dp); fold the 1/(H*W) average-
    # pool scale in so the kernel only needs spatial sums.
    w_cls_t = jnp.transpose(w_cls).astype(jnp.float32) / float(HW)
    w_cls_t = jnp.pad(w_cls_t, ((0, Cp - Cout), (0, Dp - Dout)))

    Nb = _choose_batch_block(N)
    THW = _choose_hw_tile(HW, Nb, K)
    grid = (N // Nb, pl.cdiv(HW, THW))

    out = pl.pallas_call(
        _cam_kernel,
        out_shape=jax.ShapeDtypeStruct((N, Dp), jnp.float32),
        grid_spec=pltpu.PrefetchScalarGridSpec(
            num_scalar_prefetch=0,
            grid=grid,
            in_specs=[
                pl.BlockSpec((Nb, THW, K), lambda b, s: (b, s, 0)),
                pl.BlockSpec((K, Cp), lambda b, s: (0, 0)),     # resident
                pl.BlockSpec((Cp, Dp), lambda b, s: (0, 0)),    # resident
            ],
            out_specs=pl.BlockSpec((Nb, Dp), lambda b, s: (b, 0)),
            scratch_shapes=[pltpu.VMEM((Nb, Cp), jnp.float32)],
        ),
        compiler_params=pltpu.CompilerParams(
            dimension_semantics=("parallel", "arbitrary"),
            vmem_limit_bytes=32 * 1024 * 1024),
    )(patches, w_mat, w_cls_t)
    return out[:, :Dout]


def cam_reference(x_nchw, w_conv_oihw, w_cls):
    """Pure-JAX (f32) reference matching the PyTorch forward."""
    x = jnp.transpose(x_nchw, (0, 2, 3, 1))                    # NHWC
    w = jnp.transpose(w_conv_oihw, (2, 3, 1, 0))               # HWIO
    feat = jax.lax.conv_general_dilated(
        x, w, window_strides=(1, 1), padding="SAME",
        dimension_numbers=("NHWC", "HWIO", "NHWC"))
    feat = jnp.maximum(feat, 0.0)
    pooled = jnp.mean(feat, axis=(1, 2))                       # (N, Cout)
    return pooled @ w_cls.T                                    # (N, Dout)


if __name__ == "__main__":
    # Small synthetic shapes: batch=2, in-channels=4, spatial=16x16,
    # backbone output channels (in_features_to_fc)=32, D_out (n_classes)=8.
    N, Cin, H, W = 2, 4, 16, 16
    Cout, Dout = 32, 8

    key = jax.random.PRNGKey(0)
    kx, kw, kc = jax.random.split(key, 3)
    x = jax.random.normal(kx, (N, Cin, H, W), dtype=jnp.float32)
    w_conv = 0.1 * jax.random.normal(kw, (Cout, Cin, 3, 3), dtype=jnp.float32)
    w_cls = 0.1 * jax.random.normal(kc, (Dout, Cout), dtype=jnp.float32)

    out = jax.block_until_ready(cam_forward(x, w_conv, w_cls))
    ref = jax.block_until_ready(cam_reference(x, w_conv, w_cls))

    assert out.shape == (N, Dout), out.shape
    # bf16 inputs with f32 accumulation -> relaxed tolerance vs f32 reference.
    np.testing.assert_allclose(np.asarray(out), np.asarray(ref),
                               rtol=2e-2, atol=2e-2)
    print("KERNEL_OK")
</pallas_src>

<mosaic_0001>
module attributes {stable_mosaic.version = 11 : i64} {
  func.func @_cam_kernel(%arg0: i32, %arg1: i32, %arg2: memref<2x256x36xbf16, #tpu.memory_space<vmem>>, %arg3: memref<36x128xbf16, #tpu.memory_space<vmem>>, %arg4: memref<128x128xf32, #tpu.memory_space<vmem>>, %arg5: memref<2x128xf32, #tpu.memory_space<vmem>>, %arg6: memref<2x128xf32, #tpu.memory_space<vmem>>) attributes {dimension_semantics = [#tpu.dimension_semantics<parallel>, #tpu.dimension_semantics<arbitrary>], iteration_bounds = array<i64: 1, 1>, scalar_prefetch = 0 : i64, scratch_operands = 1 : i64, tpu.core_type = #tpu.core_type<tc>, window_params = [{transform_indices = @transform_0, window_bounds = array<i64: 2, 256, 36>}, {pipeline_mode = #tpu.pipeline_mode<synchronous>, transform_indices = @transform_1, window_bounds = array<i64: 36, 128>}, {pipeline_mode = #tpu.pipeline_mode<synchronous>, transform_indices = @transform_2, window_bounds = array<i64: 128, 128>}, {transform_indices = @transform_3, window_bounds = array<i64: 2, 128>}]} {
    %c0_i32 = arith.constant 0 : i32
    %0 = arith.cmpi eq, %arg1, %c0_i32 : i32
    %1 = arith.extui %0 : i1 to i32
    %c0_i32_0 = arith.constant 0 : i32
    %2 = arith.cmpi ne, %1, %c0_i32_0 : i32
    scf.if %2 {
      %cst_22 = arith.constant 0.000000e+00 : f32
      %27 = vector.broadcast %cst_22 : f32 to vector<2x128xf32>
      %c0_23 = arith.constant 0 : index
      %c0_24 = arith.constant 0 : index
      %28 = vector.load %arg6[%c0_23, %c0_24] : memref<2x128xf32, #tpu.memory_space<vmem>>, vector<2x128xf32>
      tpu.vector_store %arg6[%c0_23, %c0_24], %27 {strides = array<i32>} : memref<2x128xf32, #tpu.memory_space<vmem>>, vector<2x128xf32>,
    } else {
    }
    %c0 = arith.constant 0 : index
    %c0_1 = arith.constant 0 : index
    %3 = vector.load %arg3[%c0, %c0_1] : memref<36x128xbf16, #tpu.memory_space<vmem>>, vector<36x128xbf16>
    %c0_2 = arith.constant 0 : index
    %c0_3 = arith.constant 0 : index
    %c0_4 = arith.constant 0 : index
    %4 = vector.load %arg2[%c0_2, %c0_3, %c0_4] : memref<2x256x36xbf16, #tpu.memory_space<vmem>>, vector<1x256x36xbf16>
    %5 = vector.shape_cast %4 : vector<1x256x36xbf16> to vector<256x36xbf16>
    %cst = arith.constant dense<0.000000e+00> : vector<256x128xf32>
    %6 = tpu.matmul %5, %3, %cst {dimension_numbers = #tpu.dot_dimension_numbers<[1], [0], [0], [1], [0, 0, 1, 1], [], []>} : vector<256x36xbf16>, vector<36x128xbf16>, vector<256x128xf32> -> vector<256x128xf32>
    %cst_5 = arith.constant 0.000000e+00 : f32
    %7 = vector.broadcast %cst_5 : f32 to vector<256x128xf32>
    %8 = arith.maximumf %6, %7 : vector<256x128xf32>
    %c0_6 = arith.constant 0 : index
    %c0_7 = arith.constant 0 : index
    %9 = vector.load %arg6[%c0_6, %c0_7] : memref<2x128xf32, #tpu.memory_space<vmem>>, vector<1x128xf32>
    %cst_8 = arith.constant dense<0.000000e+00> : vector<128xf32>
    %10 = vector.multi_reduction <add>, %8, %cst_8 [0] : vector<256x128xf32> to vector<128xf32>
    %11 = vector.shape_cast %10 : vector<128xf32> to vector<1x128xf32>
    %12 = arith.addf %9, %11 : vector<1x128xf32>
    %c0_9 = arith.constant 0 : index
    %c0_10 = arith.constant 0 : index
    %13 = vector.load %arg6[%c0_9, %c0_10] : memref<2x128xf32, #tpu.memory_space<vmem>>, vector<1x128xf32>
    tpu.vector_store %arg6[%c0_9, %c0_10], %12 {strides = array<i32>} : memref<2x128xf32, #tpu.memory_space<vmem>>, vector<1x128xf32>,
    %c1 = arith.constant 1 : index
    %c0_11 = arith.constant 0 : index
    %c0_12 = arith.constant 0 : index
    %14 = vector.load %arg2[%c1, %c0_11, %c0_12] : memref<2x256x36xbf16, #tpu.memory_space<vmem>>, vector<1x256x36xbf16>
    %15 = vector.shape_cast %14 : vector<1x256x36xbf16> to vector<256x36xbf16>
    %cst_13 = arith.constant dense<0.000000e+00> : vector<256x128xf32>
    %16 = tpu.matmul %15, %3, %cst_13 {dimension_numbers = #tpu.dot_dimension_numbers<[1], [0], [0], [1], [0, 0, 1, 1], [], []>} : vector<256x36xbf16>, vector<36x128xbf16>, vector<256x128xf32> -> vector<256x128xf32>
    %cst_14 = arith.constant 0.000000e+00 : f32
    %17 = vector.broadcast %cst_14 : f32 to vector<256x128xf32>
    %18 = arith.maximumf %16, %17 : vector<256x128xf32>
    %c1_15 = arith.constant 1 : index
    %c0_16 = arith.constant 0 : index
    %19 = vector.load %arg6[%c1_15, %c0_16] : memref<2x128xf32, #tpu.memory_space<vmem>>, vector<1x128xf32>
    %cst_17 = arith.constant dense<0.000000e+00> : vector<128xf32>
    %20 = vector.multi_reduction <add>, %18, %cst_17 [0] : vector<256x128xf32> to vector<128xf32>
    %21 = vector.shape_cast %20 : vector<128xf32> to vector<1x128xf32>
    %22 = arith.addf %19, %21 : vector<1x128xf32>
    %c1_18 = arith.constant 1 : index
    %c0_19 = arith.constant 0 : index
    %23 = vector.load %arg6[%c1_18, %c0_19] : memref<2x128xf32, #tpu.memory_space<vmem>>, vector<1x128xf32>
    tpu.vector_store %arg6[%c1_18, %c0_19], %22 {strides = array<i32>} : memref<2x128xf32, #tpu.memory_space<vmem>>, vector<1x128xf32>,
    %c0_i32_20 = arith.constant 0 : i32
    %24 = arith.cmpi eq, %arg1, %c0_i32_20 : i32
    %25 = arith.extui %24 : i1 to i32
    %c0_i32_21 = arith.constant 0 : i32
    %26 = arith.cmpi ne, %25, %c0_i32_21 : i32
    scf.if %26 {
      %c0_22 = arith.constant 0 : index
      %c0_23 = arith.constant 0 : index
      %27 = vector.load %arg6[%c0_22, %c0_23] : memref<2x128xf32, #tpu.memory_space<vmem>>, vector<2x128xf32>
      %c0_24 = arith.constant 0 : index
      %c0_25 = arith.constant 0 : index
      %28 = vector.load %arg4[%c0_24, %c0_25] : memref<128x128xf32, #tpu.memory_space<vmem>>, vector<128x128xf32>
      %cst_26 = arith.constant dense<0.000000e+00> : vector<2x128xf32>
      %29 = tpu.matmul %27, %28, %cst_26 {dimension_numbers = #tpu.dot_dimension_numbers<[1], [0], [0], [1], [0, 0, 1, 1], [], []>} : vector<2x128xf32>, vector<128x128xf32>, vector<2x128xf32> -> vector<2x128xf32>
      %c0_27 = arith.constant 0 : index
      %c0_28 = arith.constant 0 : index
      %30 = vector.load %arg5[%c0_27, %c0_28] : memref<2x128xf32, #tpu.memory_space<vmem>>, vector<2x128xf32>
      tpu.vector_store %arg5[%c0_27, %c0_28], %29 {strides = array<i32>} : memref<2x128xf32, #tpu.memory_space<vmem>>, vector<2x128xf32>,
    } else {
    }
    return
  }
  func.func @transform_0(%arg0: i32, %arg1: i32) -> (i32, i32, i32) {
    %c0_i32 = arith.constant 0 : i32
    %c0_i32_0 = arith.constant 0 : i32
    return %arg0, %arg1, %c0_i32 : i32, i32, i32
  }
  func.func @transform_1(%arg0: i32, %arg1: i32) -> (i32, i32) {
    %c0_i32 = arith.constant 0 : i32
    %c0_i32_0 = arith.constant 0 : i32
    %c0_i32_1 = arith.constant 0 : i32
    return %c0_i32, %c0_i32_0 : i32, i32
  }
  func.func @transform_2(%arg0: i32, %arg1: i32) -> (i32, i32) {
    %c0_i32 = arith.constant 0 : i32
    %c0_i32_0 = arith.constant 0 : i32
    %c0_i32_1 = arith.constant 0 : i32
    return %c0_i32, %c0_i32_0 : i32, i32
  }
  func.func @transform_3(%arg0: i32, %arg1: i32) -> (i32, i32) {
    %c0_i32 = arith.constant 0 : i32
    %c0_i32_0 = arith.constant 0 : i32
    return %arg0, %c0_i32 : i32, i32
  }
}

</mosaic_0001>

<llo_original>
// kernel: tpu_custom_call.1
$region0: #{tpu_custom_call.1}
  #allocation0 [shape = 'u32[]', space=smem, size = 0x4, offset = 0x4, fixed_abs, tag = 'smem constant byte address 0x4 - core index']
  #allocation1 [shape = 'u32[144,128]{1,0:T(1,128)}', space=vmem, size = 0x12000, scoped, tag = 'internal scratch']
  #allocation2 [shape = 'f32[2,128]{1,0:T(2,128)}', space=vmem, size = 0x400, scoped, tag = 'scratch operand']
  %s0 = inlined_call_operand.vmem [shape: bf16[2,256,36], index: 0, kind: input, shape index: {}]
  %s1 = inlined_call_operand.vmem [shape: bf16[36,128], index: 1, kind: input, shape index: {}]
  %s2 = inlined_call_operand.vmem [shape: f32[128,128], index: 2, kind: input, shape index: {}]
  %s3 = inlined_call_operand.hbm [shape: f32[2,128], index: 3, kind: output, shape index: {}]
  %s4 = sld [smem:[#allocation0]]
  $region30: #{tpu_custom_call.1} parent=0
    _
  %s6 = ssub.s32 1, %s4
  %s7 = scalar_select 0, %s6, %s4
  $region1: #{tpu_custom_call.1} parent=0
    #allocation3 [shape = 'u8[1024]{0}', space=vmem, size = 0x400, scoped, tag = 'output window, operand 0, single buffered']
    #allocation4 [shape = 's32[1]{0}', space=sflag, size = 0x4, scoped, tag = 'scoped memory for tpu_custom_call.1']
    %8 = vsyncpa [#allocation4], 0
    // Predicated region
    $region2: #{tpu_custom_call.1} parent=1 // pred_check
      _
    $region3: #{tpu_custom_call.1} parent=1 // pred_check_branch
      %10 = sbr.rel (0) target = $region5
    $region4: #{tpu_custom_call.1} parent=1 // pred_region
      _
    $region5: #{tpu_custom_call.1} parent=1 // pred_fallthru
      _
    // Predicated region
    $region6: #{tpu_custom_call.1} parent=1 // pred_check
      _
    $region7: #{tpu_custom_call.1} parent=1 // pred_check_branch
      %12 = sbr.rel (0) target = $region9
    $region8: #{tpu_custom_call.1} parent=1 // pred_region
      _
    $region9: #{tpu_custom_call.1} parent=1 // pred_fallthru
      _
    // Predicated region
    $region10: #{tpu_custom_call.1} parent=1 // pred_check
      _
    $region11: #{tpu_custom_call.1} parent=1 // pred_check_branch
      %14 = sbr.rel (0) target = $region13
    $region12: #{tpu_custom_call.1} parent=1 // pred_region
      _
    $region13: #{tpu_custom_call.1} parent=1 // pred_fallthru
      _
    %p16 = scmp.eq.s32.totalorder 0, 0
    // Predicated region
    $region14: #{tpu_custom_call.1} parent=1 // pred_check
      %p17 = pneg %p16
    $region15: #{tpu_custom_call.1} parent=1 // pred_check_branch
      %19 = sbr.rel (%p17) target = $region17
    $region16: #{tpu_custom_call.1} parent=1 // pred_region
      %20 = vst [vmem:[#allocation2] sm:$0x3] 0.0
    $region17: #{tpu_custom_call.1} parent=1 // pred_fallthru
      _
    %v21 = vld [vmem:[%s1] sm:$0xf]
    %v22 = vld [vmem:[%s1 + $0x4] sm:$0xf]
    %v23 = vld [vmem:[%s1 + $0x8] sm:$0xf]
    %v24 = vld [vmem:[%s1 + $0xc] sm:$0xf]
    %v25 = vld [vmem:[%s1 + $0x10] sm:$0x3]
    %v26 = vld [vmem:[%s0] sm:$0xf]
    %v27 = vld [vmem:[%s0 + $0x4] sm:$0xf]
    %v28 = vld [vmem:[%s0 + $0x8] sm:$0xf]
    %v29 = vld [vmem:[%s0 + $0xc] sm:$0xf]
    %v30 = vld [vmem:[%s0 + $0x10] sm:$0xf]
    %v31 = vld [vmem:[%s0 + $0x14] sm:$0xf]
    %v32 = vld [vmem:[%s0 + $0x18] sm:$0xf]
    %v33 = vld [vmem:[%s0 + $0x1c] sm:$0xf]
    %v34 = vld [vmem:[%s0 + $0x20] sm:$0xf]
    %v35 = vld [vmem:[%s0 + $0x24] sm:$0xf]
    %v36 = vld [vmem:[%s0 + $0x28] sm:$0xf]
    %v37 = vld [vmem:[%s0 + $0x2c] sm:$0xf]
    %v38 = vld [vmem:[%s0 + $0x30] sm:$0xf]
    %v39 = vld [vmem:[%s0 + $0x34] sm:$0xf]
    %v40 = vld [vmem:[%s0 + $0x38] sm:$0xf]
    %v41 = vld [vmem:[%s0 + $0x3c] sm:$0xf]
    %v42 = vld [vmem:[%s0 + $0x40] sm:$0xf]
    %v43 = vld [vmem:[%s0 + $0x44] sm:$0xf]
    %v44 = vld [vmem:[%s0 + $0x48] sm:$0xf]
    %v45 = vld [vmem:[%s0 + $0x4c] sm:$0xf]
    %v46 = vld [vmem:[%s0 + $0x50] sm:$0xf]
    %v47 = vld [vmem:[%s0 + $0x54] sm:$0xf]
    %v48 = vld [vmem:[%s0 + $0x58] sm:$0xf]
    %v49 = vld [vmem:[%s0 + $0x5c] sm:$0xf]
    %v50 = vld [vmem:[%s0 + $0x60] sm:$0xf]
    %v51 = vld [vmem:[%s0 + $0x64] sm:$0xf]
    %v52 = vld [vmem:[%s0 + $0x68] sm:$0xf]
    %v53 = vld [vmem:[%s0 + $0x6c] sm:$0xf]
    %v54 = vld [vmem:[%s0 + $0x70] sm:$0xf]
    %v55 = vld [vmem:[%s0 + $0x74] sm:$0xf]
    %v56 = vld [vmem:[%s0 + $0x78] sm:$0xf]
    %v57 = vld [vmem:[%s0 + $0x7c] sm:$0xf]
    %v90 = vunpack.c.l.b16 %v26
    %v91 = vunpack.c.l.b16 %v27
    %v92 = vunpack.c.l.b16 %v28
    %v93 = vunpack.c.l.b16 %v29
    %v94 = vunpack.c.l.b16 %v30
    %v95 = vunpack.c.l.b16 %v31
    %v96 = vunpack.c.l.b16 %v32
    %v97 = vunpack.c.l.b16 %v33
    %v98 = vunpack.c.l.b16 %v34
    %v99 = vunpack.c.l.b16 %v35
    %v100 = vunpack.c.l.b16 %v36
    %v101 = vunpack.c.l.b16 %v37
    %v102 = vunpack.c.l.b16 %v38
    %v103 = vunpack.c.l.b16 %v39
    %v104 = vunpack.c.l.b16 %v40
    %v105 = vunpack.c.l.b16 %v41
    %v106 = vunpack.c.l.b16 %v42
    %v107 = vunpack.c.l.b16 %v43
    %v108 = vunpack.c.l.b16 %v44
    %v109 = vunpack.c.l.b16 %v45
    %v110 = vunpack.c.l.b16 %v46
    %v111 = vunpack.c.l.b16 %v47
    %v112 = vunpack.c.l.b16 %v48
    %v113 = vunpack.c.l.b16 %v49
    %v114 = vunpack.c.l.b16 %v50
    %v115 = vunpack.c.l.b16 %v51
    %v116 = vunpack.c.l.b16 %v52
    %v117 = vunpack.c.l.b16 %v53
    %v118 = vunpack.c.l.b16 %v54
    %v119 = vunpack.c.l.b16 %v55
    %v120 = vunpack.c.l.b16 %v56
    %v121 = vunpack.c.l.b16 %v57
    %v122 = vpack.c.b16 %v91, %v90
    %v123 = vpack.c.b16 %v93, %v92
    %v124 = vpack.c.b16 %v95, %v94
    %v125 = vpack.c.b16 %v97, %v96
    %v126 = vpack.c.b16 %v99, %v98
    %v127 = vpack.c.b16 %v101, %v100
    %v128 = vpack.c.b16 %v103, %v102
    %v129 = vpack.c.b16 %v105, %v104
    %v130 = vpack.c.b16 %v107, %v106
    %v131 = vpack.c.b16 %v109, %v108
    %v132 = vpack.c.b16 %v111, %v110
    %v133 = vpack.c.b16 %v113, %v112
    %v134 = vpack.c.b16 %v115, %v114
    %v135 = vpack.c.b16 %v117, %v116
    %v136 = vpack.c.b16 %v119, %v118
    %v137 = vpack.c.b16 %v121, %v120
    %v143 = vunpack.c.l.b16 %v21
    %v144 = vunpack.c.l.b16 %v22
    %v145 = vunpack.c.l.b16 %v23
    %v146 = vunpack.c.l.b16 %v24
    %v147 = vunpack.c.l.b16 %v25
    %v148 = vpack.c.b16 %v144, %v143
    %v149 = vpack.c.b16 %v146, %v145
    %v150 = vpack.c.b16 %v147, %v147
    %vm153 = vcmask 293888
    %v155 = vsel %vm153, %v122, 0
    %v158 = vsel %vm153, %v123, 0
    %v161 = vsel %vm153, %v124, 0
    %v164 = vsel %vm153, %v125, 0
    %v167 = vsel %vm153, %v126, 0
    %v170 = vsel %vm153, %v127, 0
    %v173 = vsel %vm153, %v128, 0
    %v176 = vsel %vm153, %v129, 0
    %v179 = vsel %vm153, %v130, 0
    %v182 = vsel %vm153, %v131, 0
    %v185 = vsel %vm153, %v132, 0
    %v188 = vsel %vm153, %v133, 0
    %v191 = vsel %vm153, %v134, 0
    %v194 = vsel %vm153, %v135, 0
    %v197 = vsel %vm153, %v136, 0
    %v200 = vsel %vm153, %v137, 0
    %vm202 = vcmask 1041408
    %v204 = vsel %vm202, %v150, 0
    %206 = vmatprep.subr.bf16.mxu0 0
    %207 = vmatpush1.bf16.msra.mxu0 %v148
    %208 = vmatprep.subr.bf16.mxu0 0
    %209 = vmatpush1.bf16.msra.mxu0 %v149
    %210 = vmatprep.subr.bf16.mxu0 0
    %211 = vmatpush1.bf16.msra.mxu0 %v204
    %212 = vmatprep.subr.bf16.mxu0 0
    %213 = vmatpush1.bf16.msra.mxu0 0
    %214 = vmatprep.subr.bf16.mxu0 0
    %215 = vmatpush1.bf16.msra.mxu0 0
    %216 = vmatprep.subr.bf16.mxu0 0
    %217 = vmatpush1.bf16.msra.mxu0 0
    %218 = vmatprep.subr.bf16.mxu0 0
    %219 = vmatpush1.bf16.msra.mxu0 0
    %220 = vmatprep.subr.bf16.mxu0 0
    %221 = vmatpush1.bf16.msra.mxu0 0
    %222 = vmatprep.subr.bf16.mxu0 0
    %223 = vmatpush1.bf16.msra.mxu0 0
    %224 = vmatprep.subr.bf16.mxu0 0
    %225 = vmatpush1.bf16.msra.mxu0 0
    %226 = vmatprep.subr.bf16.mxu0 0
    %227 = vmatpush1.bf16.msra.mxu0 0
    %228 = vmatprep.subr.bf16.mxu0 0
    %229 = vmatpush1.bf16.msra.mxu0 0
    %230 = vmatprep.subr.bf16.mxu0 0
    %231 = vmatpush1.bf16.msra.mxu0 0
    %232 = vmatprep.subr.bf16.mxu0 0
    %233 = vmatpush1.bf16.msra.mxu0 0
    %234 = vmatprep.subr.bf16.mxu0 0
    %235 = vmatpush1.bf16.msra.mxu0 0
    %236 = vmatprep.subr.bf16.mxu0 0
    %237 = vmatpush1.bf16.msra.mxu0 0
    %238 = vmatprep.mubr.bf16.mxu0 0
    %239 = vmatmul.mubr.bf16.gmra.mrb[0].mxu0 %v155
    %v240 = vpop.f32.mrb[0].mxu0
    %v241 = vadd.f32 0.0, %v240
    %v242 = vpop.f32.mrb[0].mxu0
    %v243 = vpop.f32.mrb[0].mxu0
    %v244 = vadd.f32 0.0, %v243
    %v245 = vpop.f32.mrb[0].mxu0
    %246 = vmatprep.mubr.bf16.mxu0 0
    %247 = vmatmul.mubr.bf16.gmra.mrb[0].mxu0 %v158
    %v248 = vpop.f32.mrb[0].mxu0
    %v249 = vadd.f32 0.0, %v248
    %v250 = vpop.f32.mrb[0].mxu0
    %v251 = vpop.f32.mrb[0].mxu0
    %v252 = vadd.f32 0.0, %v251
    %v253 = vpop.f32.mrb[0].mxu0
    %254 = vmatprep.mubr.bf16.mxu0 0
    %255 = vmatmul.mubr.bf16.gmra.mrb[0].mxu0 %v161
    %v256 = vpop.f32.mrb[0].mxu0
    %v257 = vadd.f32 0.0, %v256
    %v258 = vpop.f32.mrb[0].mxu0
    %v259 = vpop.f32.mrb[0].mxu0
    %v260 = vadd.f32 0.0, %v259
    %v261 = vpop.f32.mrb[0].mxu0
    %262 = vmatprep.mubr.bf16.mxu0 0
    %263 = vmatmul.mubr.bf16.gmra.mrb[0].mxu0 %v164
    %v264 = vpop.f32.mrb[0].mxu0
    %v265 = vadd.f32 0.0, %v264
    %v266 = vpop.f32.mrb[0].mxu0
    %v267 = vpop.f32.mrb[0].mxu0
    %v268 = vadd.f32 0.0, %v267
    %v269 = vpop.f32.mrb[0].mxu0
    %270 = vmatprep.mubr.bf16.mxu0 0
    %271 = vmatmul.mubr.bf16.gmra.mrb[0].mxu0 %v167
    %v272 = vpop.f32.mrb[0].mxu0
    %v273 = vadd.f32 0.0, %v272
    %v274 = vpop.f32.mrb[0].mxu0
    %v275 = vpop.f32.mrb[0].mxu0
    %v276 = vadd.f32 0.0, %v275
    %v277 = vpop.f32.mrb[0].mxu0
    %278 = vmatprep.mubr.bf16.mxu0 0
    %279 = vmatmul.mubr.bf16.gmra.mrb[0].mxu0 %v170
    %v280 = vpop.f32.mrb[0].mxu0
    %v281 = vadd.f32 0.0, %v280
    %v282 = vpop.f32.mrb[0].mxu0
    %v283 = vpop.f32.mrb[0].mxu0
    %v284 = vadd.f32 0.0, %v283
    %v285 = vpop.f32.mrb[0].mxu0
    %286 = vmatprep.mubr.bf16.mxu0 0
    %287 = vmatmul.mubr.bf16.gmra.mrb[0].mxu0 %v173
    %v288 = vpop.f32.mrb[0].mxu0
    %v289 = vadd.f32 0.0, %v288
    %v290 = vpop.f32.mrb[0].mxu0
    %v291 = vpop.f32.mrb[0].mxu0
    %v292 = vadd.f32 0.0, %v291
    %v293 = vpop.f32.mrb[0].mxu0
    %294 = vmatprep.mubr.bf16.mxu0 0
    %295 = vmatmul.mubr.bf16.gmra.mrb[0].mxu0 %v176
    %v296 = vpop.f32.mrb[0].mxu0
    %v297 = vadd.f32 0.0, %v296
    %v298 = vpop.f32.mrb[0].mxu0
    %v299 = vpop.f32.mrb[0].mxu0
    %v300 = vadd.f32 0.0, %v299
    %v301 = vpop.f32.mrb[0].mxu0
    %302 = vmatprep.mubr.bf16.mxu0 0
    %303 = vmatmul.mubr.bf16.gmra.mrb[0].mxu0 %v179
    %v304 = vpop.f32.mrb[0].mxu0
    %v305 = vadd.f32 0.0, %v304
    %v306 = vpop.f32.mrb[0].mxu0
    %v307 = vpop.f32.mrb[0].mxu0
    %v308 = vadd.f32 0.0, %v307
    %v309 = vpop.f32.mrb[0].mxu0
    %310 = vmatprep.mubr.bf16.mxu0 0
    %311 = vmatmul.mubr.bf16.gmra.mrb[0].mxu0 %v182
    %v312 = vpop.f32.mrb[0].mxu0
    %v313 = vadd.f32 0.0, %v312
    %v314 = vpop.f32.mrb[0].mxu0
    %v315 = vpop.f32.mrb[0].mxu0
    %v316 = vadd.f32 0.0, %v315
    %v317 = vpop.f32.mrb[0].mxu0
    %318 = vmatprep.mubr.bf16.mxu0 0
    %319 = vmatmul.mubr.bf16.gmra.mrb[0].mxu0 %v185
    %v320 = vpop.f32.mrb[0].mxu0
    %v321 = vadd.f32 0.0, %v320
    %v322 = vpop.f32.mrb[0].mxu0
    %v323 = vpop.f32.mrb[0].mxu0
    %v324 = vadd.f32 0.0, %v323
    %v325 = vpop.f32.mrb[0].mxu0
    %326 = vmatprep.mubr.bf16.mxu0 0
    %327 = vmatmul.mubr.bf16.gmra.mrb[0].mxu0 %v188
    %v328 = vpop.f32.mrb[0].mxu0
    %v329 = vadd.f32 0.0, %v328
    %v330 = vpop.f32.mrb[0].mxu0
    %v331 = vpop.f32.mrb[0].mxu0
    %v332 = vadd.f32 0.0, %v331
    %v333 = vpop.f32.mrb[0].mxu0
    %334 = vmatprep.mubr.bf16.mxu0 0
    %335 = vmatmul.mubr.bf16.gmra.mrb[0].mxu0 %v191
    %v336 = vpop.f32.mrb[0].mxu0
    %v337 = vadd.f32 0.0, %v336
    %v338 = vpop.f32.mrb[0].mxu0
    %v339 = vpop.f32.mrb[0].mxu0
    %v340 = vadd.f32 0.0, %v339
    %v341 = vpop.f32.mrb[0].mxu0
    %342 = vmatprep.mubr.bf16.mxu0 0
    %343 = vmatmul.mubr.bf16.gmra.mrb[0].mxu0 %v194
    %v344 = vpop.f32.mrb[0].mxu0
    %v345 = vadd.f32 0.0, %v344
    %v346 = vpop.f32.mrb[0].mxu0
    %v347 = vpop.f32.mrb[0].mxu0
    %v348 = vadd.f32 0.0, %v347
    %v349 = vpop.f32.mrb[0].mxu0
    %350 = vmatprep.mubr.bf16.mxu0 0
    %351 = vmatmul.mubr.bf16.gmra.mrb[0].mxu0 %v197
    %v352 = vpop.f32.mrb[0].mxu0
    %v353 = vadd.f32 0.0, %v352
    %v354 = vpop.f32.mrb[0].mxu0
    %v355 = vpop.f32.mrb[0].mxu0
    %v356 = vadd.f32 0.0, %v355
    %v357 = vpop.f32.mrb[0].mxu0
    %358 = vmatprep.mubr.bf16.mxu0 0
    %359 = vmatmul.mubr.bf16.gmra.mrb[0].mxu0 %v200
    %v360 = vpop.f32.mrb[0].mxu0
    %v361 = vadd.f32 0.0, %v360
    %v362 = vpop.f32.mrb[0].mxu0
    %v363 = vpop.f32.mrb[0].mxu0
    %v364 = vadd.f32 0.0, %v363
    %v365 = vpop.f32.mrb[0].mxu0
    %366 = vdwg.mxu0
    %v367 = vmax.f32 %v241, 0.0
    %v368 = vmax.f32 %v244, 0.0
    %v369 = vmax.f32 %v249, 0.0
    %v370 = vmax.f32 %v252, 0.0
    %v371 = vmax.f32 %v257, 0.0
    %v372 = vmax.f32 %v260, 0.0
    %v373 = vmax.f32 %v265, 0.0
    %v374 = vmax.f32 %v268, 0.0
    %v375 = vmax.f32 %v273, 0.0
    %v376 = vmax.f32 %v276, 0.0
    %v377 = vmax.f32 %v281, 0.0
    %v378 = vmax.f32 %v284, 0.0
    %v379 = vmax.f32 %v289, 0.0
    %v380 = vmax.f32 %v292, 0.0
    %v381 = vmax.f32 %v297, 0.0
    %v382 = vmax.f32 %v300, 0.0
    %v383 = vmax.f32 %v305, 0.0
    %v384 = vmax.f32 %v308, 0.0
    %v385 = vmax.f32 %v313, 0.0
    %v386 = vmax.f32 %v316, 0.0
    %v387 = vmax.f32 %v321, 0.0
    %v388 = vmax.f32 %v324, 0.0
    %v389 = vmax.f32 %v329, 0.0
    %v390 = vmax.f32 %v332, 0.0
    %v391 = vmax.f32 %v337, 0.0
    %v392 = vmax.f32 %v340, 0.0
    %v393 = vmax.f32 %v345, 0.0
    %v394 = vmax.f32 %v348, 0.0
    %v395 = vmax.f32 %v353, 0.0
    %v396 = vmax.f32 %v356, 0.0
    %v397 = vmax.f32 %v361, 0.0
    %v398 = vmax.f32 %v364, 0.0
    %v399 = vld [vmem:[#allocation2] sm:$0x1]
    %v400 = vadd.f32 %v367, %v368
    %v401 = vadd.f32 %v400, %v369
    %v402 = vadd.f32 %v401, %v370
    %v403 = vadd.f32 %v402, %v371
    %v404 = vadd.f32 %v403, %v372
    %v405 = vadd.f32 %v404, %v373
    %v406 = vadd.f32 %v405, %v374
    %v407 = vadd.f32 %v406, %v375
    %v408 = vadd.f32 %v407, %v376
    %v409 = vadd.f32 %v408, %v377
    %v410 = vadd.f32 %v409, %v378
    %v411 = vadd.f32 %v410, %v379
    %v412 = vadd.f32 %v411, %v380
    %v413 = vadd.f32 %v412, %v381
    %v414 = vadd.f32 %v413, %v382
    %v415 = vadd.f32 %v414, %v383
    %v416 = vadd.f32 %v415, %v384
    %v417 = vadd.f32 %v416, %v385
    %v418 = vadd.f32 %v417, %v386
    %v419 = vadd.f32 %v418, %v387
    %v420 = vadd.f32 %v419, %v388
    %v421 = vadd.f32 %v420, %v389
    %v422 = vadd.f32 %v421, %v390
    %v423 = vadd.f32 %v422, %v391
    %v424 = vadd.f32 %v423, %v392
    %v425 = vadd.f32 %v424, %v393
    %v426 = vadd.f32 %v425, %v394
    %v427 = vadd.f32 %v426, %v395
    %v428 = vadd.f32 %v427, %v396
    %v429 = vadd.f32 %v428, %v397
    %v430 = vadd.f32 %v429, %v398
    %v431 = vrot.slane %v430, 4
    %v432 = vadd.f32 %v430, %v431
    %v433 = vrot.slane %v432, 2
    %v434 = vadd.f32 %v432, %v433
    %v435 = vrot.slane %v434, 1
    %v436 = vadd.f32 %v434, %v435
    %v437 = vadd.f32 %v399, %v436
    %438 = vst [vmem:[#allocation2] sm:$0x1] %v437
    %s439 = scalar_lea.vmem %s0, 128
    %v440 = vld [vmem:[%s439] sm:$0xf]
    %v441 = vld [vmem:[%s439 + $0x4] sm:$0xf]
    %v442 = vld [vmem:[%s439 + $0x8] sm:$0xf]
    %v443 = vld [vmem:[%s439 + $0xc] sm:$0xf]
    %v444 = vld [vmem:[%s439 + $0x10] sm:$0xf]
    %v445 = vld [vmem:[%s439 + $0x14] sm:$0xf]
    %v446 = vld [vmem:[%s439 + $0x18] sm:$0xf]
    %v447 = vld [vmem:[%s439 + $0x1c] sm:$0xf]
    %v448 = vld [vmem:[%s439 + $0x20] sm:$0xf]
    %v449 = vld [vmem:[%s439 + $0x24] sm:$0xf]
    %v450 = vld [vmem:[%s439 + $0x28] sm:$0xf]
    %v451 = vld [vmem:[%s439 + $0x2c] sm:$0xf]
    %v452 = vld [vmem:[%s439 + $0x30] sm:$0xf]
    %v453 = vld [vmem:[%s439 + $0x34] sm:$0xf]
    %v454 = vld [vmem:[%s439 + $0x38] sm:$0xf]
    %v455 = vld [vmem:[%s439 + $0x3c] sm:$0xf]
    %v456 = vld [vmem:[%s439 + $0x40] sm:$0xf]
    %v457 = vld [vmem:[%s439 + $0x44] sm:$0xf]
    %v458 = vld [vmem:[%s439 + $0x48] sm:$0xf]
    %v459 = vld [vmem:[%s439 + $0x4c] sm:$0xf]
    %v460 = vld [vmem:[%s439 + $0x50] sm:$0xf]
    %v461 = vld [vmem:[%s439 + $0x54] sm:$0xf]
    %v462 = vld [vmem:[%s439 + $0x58] sm:$0xf]
    %v463 = vld [vmem:[%s439 + $0x5c] sm:$0xf]
    %v464 = vld [vmem:[%s439 + $0x60] sm:$0xf]
    %v465 = vld [vmem:[%s439 + $0x64] sm:$0xf]
    %v466 = vld [vmem:[%s439 + $0x68] sm:$0xf]
    %v467 = vld [vmem:[%s439 + $0x6c] sm:$0xf]
    %v468 = vld [vmem:[%s439 + $0x70] sm:$0xf]
    %v469 = vld [vmem:[%s439 + $0x74] sm:$0xf]
    %v470 = vld [vmem:[%s439 + $0x78] sm:$0xf]
    %v471 = vld [vmem:[%s439 + $0x7c] sm:$0xf]
    %v504 = vunpack.c.l.b16 %v440
    %v505 = vunpack.c.l.b16 %v441
    %v506 = vunpack.c.l.b16 %v442
    %v507 = vunpack.c.l.b16 %v443
    %v508 = vunpack.c.l.b16 %v444
    %v509 = vunpack.c.l.b16 %v445
    %v510 = vunpack.c.l.b16 %v446
    %v511 = vunpack.c.l.b16 %v447
    %v512 = vunpack.c.l.b16 %v448
    %v513 = vunpack.c.l.b16 %v449
    %v514 = vunpack.c.l.b16 %v450
    %v515 = vunpack.c.l.b16 %v451
    %v516 = vunpack.c.l.b16 %v452
    %v517 = vunpack.c.l.b16 %v453
    %v518 = vunpack.c.l.b16 %v454
    %v519 = vunpack.c.l.b16 %v455
    %v520 = vunpack.c.l.b16 %v456
    %v521 = vunpack.c.l.b16 %v457
    %v522 = vunpack.c.l.b16 %v458
    %v523 = vunpack.c.l.b16 %v459
    %v524 = vunpack.c.l.b16 %v460
    %v525 = vunpack.c.l.b16 %v461
    %v526 = vunpack.c.l.b16 %v462
    %v527 = vunpack.c.l.b16 %v463
    %v528 = vunpack.c.l.b16 %v464
    %v529 = vunpack.c.l.b16 %v465
    %v530 = vunpack.c.l.b16 %v466
    %v531 = vunpack.c.l.b16 %v467
    %v532 = vunpack.c.l.b16 %v468
    %v533 = vunpack.c.l.b16 %v469
    %v534 = vunpack.c.l.b16 %v470
    %v535 = vunpack.c.l.b16 %v471
    %v536 = vpack.c.b16 %v505, %v504
    %v537 = vpack.c.b16 %v507, %v506
    %v538 = vpack.c.b16 %v509, %v508
    %v539 = vpack.c.b16 %v511, %v510
    %v540 = vpack.c.b16 %v513, %v512
    %v541 = vpack.c.b16 %v515, %v514
    %v542 = vpack.c.b16 %v517, %v516
    %v543 = vpack.c.b16 %v519, %v518
    %v544 = vpack.c.b16 %v521, %v520
    %v545 = vpack.c.b16 %v523, %v522
    %v546 = vpack.c.b16 %v525, %v524
    %v547 = vpack.c.b16 %v527, %v526
    %v548 = vpack.c.b16 %v529, %v528
    %v549 = vpack.c.b16 %v531, %v530
    %v550 = vpack.c.b16 %v533, %v532
    %v551 = vpack.c.b16 %v535, %v534
    %v553 = vsel %vm153, %v536, 0
    %v556 = vsel %vm153, %v537, 0
    %v559 = vsel %vm153, %v538, 0
    %v562 = vsel %vm153, %v539, 0
    %v565 = vsel %vm153, %v540, 0
    %v568 = vsel %vm153, %v541, 0
    %v571 = vsel %vm153, %v542, 0
    %v574 = vsel %vm153, %v543, 0
    %v577 = vsel %vm153, %v544, 0
    %v580 = vsel %vm153, %v545, 0
    %v583 = vsel %vm153, %v546, 0
    %v586 = vsel %vm153, %v547, 0
    %v589 = vsel %vm153, %v548, 0
    %v592 = vsel %vm153, %v549, 0
    %v595 = vsel %vm153, %v550, 0
    %v598 = vsel %vm153, %v551, 0
    %600 = vmatprep.subr.bf16.mxu0 0
    %601 = vmatpush1.bf16.msra.mxu0 %v148
    %602 = vmatprep.subr.bf16.mxu0 0
    %603 = vmatpush1.bf16.msra.mxu0 %v149
    %604 = vmatprep.subr.bf16.mxu0 0
    %605 = vmatpush1.bf16.msra.mxu0 %v204
    %606 = vmatprep.subr.bf16.mxu0 0
    %607 = vmatpush1.bf16.msra.mxu0 0
    %608 = vmatprep.subr.bf16.mxu0 0
    %609 = vmatpush1.bf16.msra.mxu0 0
    %610 = vmatprep.subr.bf16.mxu0 0
    %611 = vmatpush1.bf16.msra.mxu0 0
    %612 = vmatprep.subr.bf16.mxu0 0
    %613 = vmatpush1.bf16.msra.mxu0 0
    %614 = vmatprep.subr.bf16.mxu0 0
    %615 = vmatpush1.bf16.msra.mxu0 0
    %616 = vmatprep.subr.bf16.mxu0 0
    %617 = vmatpush1.bf16.msra.mxu0 0
    %618 = vmatprep.subr.bf16.mxu0 0
    %619 = vmatpush1.bf16.msra.mxu0 0
    %620 = vmatprep.subr.bf16.mxu0 0
    %621 = vmatpush1.bf16.msra.mxu0 0
    %622 = vmatprep.subr.bf16.mxu0 0
    %623 = vmatpush1.bf16.msra.mxu0 0
    %624 = vmatprep.subr.bf16.mxu0 0
    %625 = vmatpush1.bf16.msra.mxu0 0
    %626 = vmatprep.subr.bf16.mxu0 0
    %627 = vmatpush1.bf16.msra.mxu0 0
    %628 = vmatprep.subr.bf16.mxu0 0
    %629 = vmatpush1.bf16.msra.mxu0 0
    %630 = vmatprep.subr.bf16.mxu0 0
    %631 = vmatpush1.bf16.msra.mxu0 0
    %632 = vmatprep.mubr.bf16.mxu0 0
    %633 = vmatmul.mubr.bf16.gmra.mrb[0].mxu0 %v553
    %v634 = vpop.f32.mrb[0].mxu0
    %v635 = vadd.f32 0.0, %v634
    %v636 = vpop.f32.mrb[0].mxu0
    %v637 = vpop.f32.mrb[0].mxu0
    %v638 = vadd.f32 0.0, %v637
    %v639 = vpop.f32.mrb[0].mxu0
    %640 = vmatprep.mubr.bf16.mxu0 0
    %641 = vmatmul.mubr.bf16.gmra.mrb[0].mxu0 %v556
    %v642 = vpop.f32.mrb[0].mxu0
    %v643 = vadd.f32 0.0, %v642
    %v644 = vpop.f32.mrb[0].mxu0
    %v645 = vpop.f32.mrb[0].mxu0
    %v646 = vadd.f32 0.0, %v645
    %v647 = vpop.f32.mrb[0].mxu0
    %648 = vmatprep.mubr.bf16.mxu0 0
    %649 = vmatmul.mubr.bf16.gmra.mrb[0].mxu0 %v559
    %v650 = vpop.f32.mrb[0].mxu0
    %v651 = vadd.f32 0.0, %v650
    %v652 = vpop.f32.mrb[0].mxu0
    %v653 = vpop.f32.mrb[0].mxu0
    %v654 = vadd.f32 0.0, %v653
    %v655 = vpop.f32.mrb[0].mxu0
    %656 = vmatprep.mubr.bf16.mxu0 0
    %657 = vmatmul.mubr.bf16.gmra.mrb[0].mxu0 %v562
    %v658 = vpop.f32.mrb[0].mxu0
    %v659 = vadd.f32 0.0, %v658
    %v660 = vpop.f32.mrb[0].mxu0
    %v661 = vpop.f32.mrb[0].mxu0
    %v662 = vadd.f32 0.0, %v661
    %v663 = vpop.f32.mrb[0].mxu0
    %664 = vmatprep.mubr.bf16.mxu0 0
    %665 = vmatmul.mubr.bf16.gmra.mrb[0].mxu0 %v565
    %v666 = vpop.f32.mrb[0].mxu0
    %v667 = vadd.f32 0.0, %v666
    %v668 = vpop.f32.mrb[0].mxu0
    %v669 = vpop.f32.mrb[0].mxu0
    %v670 = vadd.f32 0.0, %v669
    %v671 = vpop.f32.mrb[0].mxu0
    %672 = vmatprep.mubr.bf16.mxu0 0
    %673 = vmatmul.mubr.bf16.gmra.mrb[0].mxu0 %v568
    %v674 = vpop.f32.mrb[0].mxu0
    %v675 = vadd.f32 0.0, %v674
    %v676 = vpop.f32.mrb[0].mxu0
    %v677 = vpop.f32.mrb[0].mxu0
    %v678 = vadd.f32 0.0, %v677
    %v679 = vpop.f32.mrb[0].mxu0
    %680 = vmatprep.mubr.bf16.mxu0 0
    %681 = vmatmul.mubr.bf16.gmra.mrb[0].mxu0 %v571
    %v682 = vpop.f32.mrb[0].mxu0
    %v683 = vadd.f32 0.0, %v682
    %v684 = vpop.f32.mrb[0].mxu0
    %v685 = vpop.f32.mrb[0].mxu0
    %v686 = vadd.f32 0.0, %v685
    %v687 = vpop.f32.mrb[0].mxu0
    %688 = vmatprep.mubr.bf16.mxu0 0
    %689 = vmatmul.mubr.bf16.gmra.mrb[0].mxu0 %v574
    %v690 = vpop.f32.mrb[0].mxu0
    %v691 = vadd.f32 0.0, %v690
    %v692 = vpop.f32.mrb[0].mxu0
    %v693 = vpop.f32.mrb[0].mxu0
    %v694 = vadd.f32 0.0, %v693
    %v695 = vpop.f32.mrb[0].mxu0
    %696 = vmatprep.mubr.bf16.mxu0 0
    %697 = vmatmul.mubr.bf16.gmra.mrb[0].mxu0 %v577
    %v698 = vpop.f32.mrb[0].mxu0
    %v699 = vadd.f32 0.0, %v698
    %v700 = vpop.f32.mrb[0].mxu0
    %v701 = vpop.f32.mrb[0].mxu0
    %v702 = vadd.f32 0.0, %v701
    %v703 = vpop.f32.mrb[0].mxu0
    %704 = vmatprep.mubr.bf16.mxu0 0
    %705 = vmatmul.mubr.bf16.gmra.mrb[0].mxu0 %v580
    %v706 = vpop.f32.mrb[0].mxu0
    %v707 = vadd.f32 0.0, %v706
    %v708 = vpop.f32.mrb[0].mxu0
    %v709 = vpop.f32.mrb[0].mxu0
    %v710 = vadd.f32 0.0, %v709
    %v711 = vpop.f32.mrb[0].mxu0
    %712 = vmatprep.mubr.bf16.mxu0 0
    %713 = vmatmul.mubr.bf16.gmra.mrb[0].mxu0 %v583
    %v714 = vpop.f32.mrb[0].mxu0
    %v715 = vadd.f32 0.0, %v714
    %v716 = vpop.f32.mrb[0].mxu0
    %v717 = vpop.f32.mrb[0].mxu0
    %v718 = vadd.f32 0.0, %v717
    %v719 = vpop.f32.mrb[0].mxu0
    %720 = vmatprep.mubr.bf16.mxu0 0
    %721 = vmatmul.mubr.bf16.gmra.mrb[0].mxu0 %v586
    %v722 = vpop.f32.mrb[0].mxu0
    %v723 = vadd.f32 0.0, %v722
    %v724 = vpop.f32.mrb[0].mxu0
    %v725 = vpop.f32.mrb[0].mxu0
    %v726 = vadd.f32 0.0, %v725
    %v727 = vpop.f32.mrb[0].mxu0
    %728 = vmatprep.mubr.bf16.mxu0 0
    %729 = vmatmul.mubr.bf16.gmra.mrb[0].mxu0 %v589
    %v730 = vpop.f32.mrb[0].mxu0
    %v731 = vadd.f32 0.0, %v730
    %v732 = vpop.f32.mrb[0].mxu0
    %v733 = vpop.f32.mrb[0].mxu0
    %v734 = vadd.f32 0.0, %v733
    %v735 = vpop.f32.mrb[0].mxu0
    %736 = vmatprep.mubr.bf16.mxu0 0
    %737 = vmatmul.mubr.bf16.gmra.mrb[0].mxu0 %v592
    %v738 = vpop.f32.mrb[0].mxu0
    %v739 = vadd.f32 0.0, %v738
    %v740 = vpop.f32.mrb[0].mxu0
    %v741 = vpop.f32.mrb[0].mxu0
    %v742 = vadd.f32 0.0, %v741
    %v743 = vpop.f32.mrb[0].mxu0
    %744 = vmatprep.mubr.bf16.mxu0 0
    %745 = vmatmul.mubr.bf16.gmra.mrb[0].mxu0 %v595
    %v746 = vpop.f32.mrb[0].mxu0
    %v747 = vadd.f32 0.0, %v746
    %v748 = vpop.f32.mrb[0].mxu0
    %v749 = vpop.f32.mrb[0].mxu0
    %v750 = vadd.f32 0.0, %v749
    %v751 = vpop.f32.mrb[0].mxu0
    %752 = vmatprep.mubr.bf16.mxu0 0
    %753 = vmatmul.mubr.bf16.gmra.mrb[0].mxu0 %v598
    %v754 = vpop.f32.mrb[0].mxu0
    %v755 = vadd.f32 0.0, %v754
    %v756 = vpop.f32.mrb[0].mxu0
    %v757 = vpop.f32.mrb[0].mxu0
    %v758 = vadd.f32 0.0, %v757
    %v759 = vpop.f32.mrb[0].mxu0
    %760 = vdwg.mxu0
    %v761 = vmax.f32 %v635, 0.0
    %v762 = vmax.f32 %v638, 0.0
    %v763 = vmax.f32 %v643, 0.0
    %v764 = vmax.f32 %v646, 0.0
    %v765 = vmax.f32 %v651, 0.0
    %v766 = vmax.f32 %v654, 0.0
    %v767 = vmax.f32 %v659, 0.0
    %v768 = vmax.f32 %v662, 0.0
    %v769 = vmax.f32 %v667, 0.0
    %v770 = vmax.f32 %v670, 0.0
    %v771 = vmax.f32 %v675, 0.0
    %v772 = vmax.f32 %v678, 0.0
    %v773 = vmax.f32 %v683, 0.0
    %v774 = vmax.f32 %v686, 0.0
    %v775 = vmax.f32 %v691, 0.0
    %v776 = vmax.f32 %v694, 0.0
    %v777 = vmax.f32 %v699, 0.0
    %v778 = vmax.f32 %v702, 0.0
    %v779 = vmax.f32 %v707, 0.0
    %v780 = vmax.f32 %v710, 0.0
    %v781 = vmax.f32 %v715, 0.0
    %v782 = vmax.f32 %v718, 0.0
    %v783 = vmax.f32 %v723, 0.0
    %v784 = vmax.f32 %v726, 0.0
    %v785 = vmax.f32 %v731, 0.0
    %v786 = vmax.f32 %v734, 0.0
    %v787 = vmax.f32 %v739, 0.0
    %v788 = vmax.f32 %v742, 0.0
    %v789 = vmax.f32 %v747, 0.0
    %v790 = vmax.f32 %v750, 0.0
    %v791 = vmax.f32 %v755, 0.0
    %v792 = vmax.f32 %v758, 0.0
    %v793 = vld [vmem:[#allocation2 + $0x1] sm:$0x1]
    %v794 = vadd.f32 %v761, %v762
    %v795 = vadd.f32 %v794, %v763
    %v796 = vadd.f32 %v795, %v764
    %v797 = vadd.f32 %v796, %v765
    %v798 = vadd.f32 %v797, %v766
    %v799 = vadd.f32 %v798, %v767
    %v800 = vadd.f32 %v799, %v768
    %v801 = vadd.f32 %v800, %v769
    %v802 = vadd.f32 %v801, %v770
    %v803 = vadd.f32 %v802, %v771
    %v804 = vadd.f32 %v803, %v772
    %v805 = vadd.f32 %v804, %v773
    %v806 = vadd.f32 %v805, %v774
    %v807 = vadd.f32 %v806, %v775
    %v808 = vadd.f32 %v807, %v776
    %v809 = vadd.f32 %v808, %v777
    %v810 = vadd.f32 %v809, %v778
    %v811 = vadd.f32 %v810, %v779
    %v812 = vadd.f32 %v811, %v780
    %v813 = vadd.f32 %v812, %v781
    %v814 = vadd.f32 %v813, %v782
    %v815 = vadd.f32 %v814, %v783
    %v816 = vadd.f32 %v815, %v784
    %v817 = vadd.f32 %v816, %v785
    %v818 = vadd.f32 %v817, %v786
    %v819 = vadd.f32 %v818, %v787
    %v820 = vadd.f32 %v819, %v788
    %v821 = vadd.f32 %v820, %v789
    %v822 = vadd.f32 %v821, %v790
    %v823 = vadd.f32 %v822, %v791
    %v824 = vadd.f32 %v823, %v792
    %v825 = vrot.slane %v824, 4
    %v826 = vadd.f32 %v824, %v825
    %v827 = vrot.slane %v826, 2
    %v828 = vadd.f32 %v826, %v827
    %v829 = vrot.slane %v828, 1
    %v830 = vadd.f32 %v828, %v829
    %v831 = vadd.f32 %v793, %v830
    %832 = vst [vmem:[#allocation2 + $0x1] sm:$0x1] %v831
    // Predicated region
    $region18: #{tpu_custom_call.1} parent=1 // pred_check
      %p833 = pneg %p16
    $region19: #{tpu_custom_call.1} parent=1 // pred_check_branch
      %835 = sbr.rel (%p833) target = $region21
    $region20: #{tpu_custom_call.1} parent=1 // pred_region
      %v836 = vld [vmem:[#allocation2] sm:$0x3]
      %v837 = vld [vmem:[%s2] sm:$0xff]
      %v838 = vld [vmem:[%s2 + $0x8] sm:$0xff]
      %v839 = vld [vmem:[%s2 + $0x10] sm:$0xff]
      %v840 = vld [vmem:[%s2 + $0x18] sm:$0xff]
      %v841 = vld [vmem:[%s2 + $0x20] sm:$0xff]
      %v842 = vld [vmem:[%s2 + $0x28] sm:$0xff]
      %v843 = vld [vmem:[%s2 + $0x30] sm:$0xff]
      %v844 = vld [vmem:[%s2 + $0x38] sm:$0xff]
      %v845 = vld [vmem:[%s2 + $0x40] sm:$0xff]
      %v846 = vld [vmem:[%s2 + $0x48] sm:$0xff]
      %v847 = vld [vmem:[%s2 + $0x50] sm:$0xff]
      %v848 = vld [vmem:[%s2 + $0x58] sm:$0xff]
      %v849 = vld [vmem:[%s2 + $0x60] sm:$0xff]
      %v850 = vld [vmem:[%s2 + $0x68] sm:$0xff]
      %v851 = vld [vmem:[%s2 + $0x70] sm:$0xff]
      %v852 = vld [vmem:[%s2 + $0x78] sm:$0xff]
      %853 = vmatprep.subr.mxu0 0.0
      %854 = vmatpush1.msra.mxu0 %v837
      %855 = vmatprep.subr.mxu0 0.0
      %856 = vmatpush1.msra.mxu0 %v838
      %857 = vmatprep.subr.mxu0 0.0
      %858 = vmatpush1.msra.mxu0 %v839
      %859 = vmatprep.subr.mxu0 0.0
      %860 = vmatpush1.msra.mxu0 %v840
      %861 = vmatprep.subr.mxu0 0.0
      %862 = vmatpush1.msra.mxu0 %v841
      %863 = vmatprep.subr.mxu0 0.0
      %864 = vmatpush1.msra.mxu0 %v842
      %865 = vmatprep.subr.mxu0 0.0
      %866 = vmatpush1.msra.mxu0 %v843
      %867 = vmatprep.subr.mxu0 0.0
      %868 = vmatpush1.msra.mxu0 %v844
      %869 = vmatprep.subr.mxu0 0.0
      %870 = vmatpush1.msra.mxu0 %v845
      %871 = vmatprep.subr.mxu0 0.0
      %872 = vmatpush1.msra.mxu0 %v846
      %873 = vmatprep.subr.mxu0 0.0
      %874 = vmatpush1.msra.mxu0 %v847
      %875 = vmatprep.subr.mxu0 0.0
      %876 = vmatpush1.msra.mxu0 %v848
      %877 = vmatprep.subr.mxu0 0.0
      %878 = vmatpush1.msra.mxu0 %v849
      %879 = vmatprep.subr.mxu0 0.0
      %880 = vmatpush1.msra.mxu0 %v850
      %881 = vmatprep.subr.mxu0 0.0
      %882 = vmatpush1.msra.mxu0 %v851
      %883 = vmatprep.subr.mxu0 0.0
      %884 = vmatpush1.msra.mxu0 %v852
      %885 = vmatprep.subr.mxu0 0.0
      %886 = vmatpush1.msra.mxu0 0.0
      %887 = vmatprep.subr.mxu0 0.0
      %888 = vmatpush1.msra.mxu0 0.0
      %889 = vmatprep.subr.mxu0 0.0
      %890 = vmatpush1.msra.mxu0 0.0
      %891 = vmatprep.subr.mxu0 0.0
      %892 = vmatpush1.msra.mxu0 0.0
      %893 = vmatprep.subr.mxu0 0.0
      %894 = vmatpush1.msra.mxu0 0.0
      %895 = vmatprep.subr.mxu0 0.0
      %896 = vmatpush1.msra.mxu0 0.0
      %897 = vmatprep.subr.mxu0 0.0
      %898 = vmatpush1.msra.mxu0 0.0
      %899 = vmatprep.subr.mxu0 0.0
      %900 = vmatpush1.msra.mxu0 0.0
      %901 = vmatprep.subr.mxu0 0.0
      %902 = vmatpush1.msra.mxu0 0.0
      %903 = vmatprep.subr.mxu0 0.0
      %904 = vmatpush1.msra.mxu0 0.0
      %905 = vmatprep.subr.mxu0 0.0
      %906 = vmatpush1.msra.mxu0 0.0
      %907 = vmatprep.subr.mxu0 0.0
      %908 = vmatpush1.msra.mxu0 0.0
      %909 = vmatprep.subr.mxu0 0.0
      %910 = vmatpush1.msra.mxu0 0.0
      %911 = vmatprep.subr.mxu0 0.0
      %912 = vmatpush1.msra.mxu0 0.0
      %913 = vmatprep.subr.mxu0 0.0
      %914 = vmatpush1.msra.mxu0 0.0
      %915 = vmatprep.subr.mxu0 0.0
      %916 = vmatpush1.msra.mxu0 0.0
      %917 = vmatprep.mubr.f32.mxu0 0.0
      %918 = vmatmul.mubr.f32.gmra.mrb[0].mxu0 %v836
      %v919 = vpop.f32.mrb[0].mxu0
      %v920 = vadd.f32 0.0, %v919
      %v921 = vpop.f32.mrb[0].mxu0
      %922 = vdwg.mxu0
      %923 = vst [vmem:[#allocation3] sm:$0x3] %v920
    $region21: #{tpu_custom_call.1} parent=1 // pred_fallthru
      _
    // Predicated region
    $region22: #{tpu_custom_call.1} parent=1 // pred_check
      _
    $region23: #{tpu_custom_call.1} parent=1 // pred_check_branch
      %925 = sbr.rel (0) target = $region25
    $region24: #{tpu_custom_call.1} parent=1 // pred_region
      %s927 = ssub.s32 32, 32
      %928 = vsyncadd [#allocation4], %s927
      %s930 = sshll.u32 [#allocation3], 4
      %s931 = int_to_ptr.vmem [resolvable:$true] %s930
      %933 = dma.vmem_to_hbm [thread:$0]  %s931, 32, %s3, [#allocation4]
    $region25: #{tpu_custom_call.1} parent=1 // pred_fallthru
      _
    // Predicated region
    $region26: #{tpu_custom_call.1} parent=1 // pred_check
      _
    $region27: #{tpu_custom_call.1} parent=1 // pred_check_branch
      %935 = sbr.rel (0) target = $region29
    $region28: #{tpu_custom_call.1} parent=1 // pred_region
      %936 = dma.done [#allocation4], 32
    $region29: #{tpu_custom_call.1} parent=1 // pred_fallthru
      _
    %937 = vsyncpa [#allocation4], 1

</llo_original>
